<compile_context>
chip_gen: v6e
topology: v6e:2x2x1
jax: 0.10.0
libtpu: 0.0.40
codegen_flags: <defaults>
</compile_context>

<pallas_src>
import functools

import jax
import jax.numpy as jnp
from jax.experimental import pallas as pl
from jax.experimental.pallas import tpu as pltpu

LANE = 128


def _round_up(x, m):
    return ((x + m - 1) // m) * m


# ---------------------------------------------------------------------------
# Kernels
# ---------------------------------------------------------------------------
# Packed parameter buffer layout (all rows lane-padded to PAD columns, f32):
#   rows [0 : PAD)         w2   (hid x out, zero padded)
#   rows [PAD : PAD+C)     w1/S (C x hid, zero padded)   -- 1/S pool scale folded in
#   row  PAD+C             b1   (hid, zero padded)
#   row  PAD+C+1           b2   (out, zero padded)
#   row  PAD+C+2           semhash column mask (out, zero padded)


def _pool_fc(x_ref, p_ref, C, PAD):
    """avg-pool -> fc1 -> relu -> fc2 for a (TB, C, S) batch tile.  Returns (TB, PAD)."""
    x = x_ref[...].astype(jnp.float32)                       # (TB, C, S)
    pooled = jnp.sum(x, axis=-1)                             # (TB, C); 1/S folded into w1

    w2 = p_ref[0:PAD, :]                                     # (PAD, PAD)
    w1 = p_ref[PAD:PAD + C, :]                               # (C, PAD)
    b1 = p_ref[PAD + C:PAD + C + 1, :]                       # (1, PAD)
    b2 = p_ref[PAD + C + 1:PAD + C + 2, :]                   # (1, PAD)

    # fc1: batched MXU matmul.  Zero-padded w1 columns keep padded hidden units at
    # exactly 0 after the ReLU.
    h = jnp.dot(pooled, w1, preferred_element_type=jnp.float32) + b1     # (TB, PAD)
    h = jnp.maximum(h, 0.0)

    # fc2: bf16 operands, f32 accumulation (avoids v5e's multi-pass f32 matmul).
    y = jnp.dot(h.astype(jnp.bfloat16), w2.astype(jnp.bfloat16),
                preferred_element_type=jnp.float32) + b2                 # (TB, PAD)
    return y


def ad_block_train_kernel(x_ref, p_ref, noise_ref, o_ref, *, C, PAD):
    y = _pool_fc(x_ref, p_ref, C, PAD)                       # (TB, PAD)
    g = noise_ref[...] + y                                   # g = randn + y

    # v1 = clamp(1.2 * sigmoid(g) - 0.1, 0, 1); divide on the EUP (approx recip).
    sig = pl.reciprocal(1.0 + jnp.exp(-g), approx=True)
    v1 = jnp.clip(1.2 * sig - 0.1, 0.0, 1.0)
    v2 = (g > 0.0).astype(jnp.float32)                       # (g > 0).float()

    # semhash: randomly selected columns take the hard threshold v2, rest keep v1.
    mask = p_ref[PAD + C + 2:PAD + C + 3, :]                 # (1, PAD) broadcast over TB
    o_ref[...] = jnp.where(mask > 0.5, v2, v1)


def ad_block_eval_kernel(x_ref, p_ref, o_ref, *, C, PAD):
    y = _pool_fc(x_ref, p_ref, C, PAD)
    o_ref[...] = (y > 0.0).astype(jnp.float32)               # eval: (y > 0).float()


# ---------------------------------------------------------------------------
# Wrapper
# ---------------------------------------------------------------------------
def _pack_params(w1, b1, w2, b2, col_mask, pad):
    """Pack all small operands into one lane-dense (pad + C + 3, pad) buffer."""
    C, hid = w1.shape
    out = w2.shape[1]
    w2_p = jnp.zeros((pad, pad), jnp.float32).at[:hid, :out].set(w2)
    w1_p = jnp.zeros((C, pad), jnp.float32).at[:, :hid].set(w1)
    b1_p = jnp.zeros((1, pad), jnp.float32).at[0, :hid].set(b1)
    b2_p = jnp.zeros((1, pad), jnp.float32).at[0, :out].set(b2)
    m_p = jnp.zeros((1, pad), jnp.float32).at[0, :out].set(col_mask)
    return jnp.concatenate([w2_p, w1_p, b1_p, b2_p, m_p], axis=0)


def _choose_tb(B, C, S, itemsize):
    """Batch-tile rows per grid step.

    ~2 MiB x block (measured: ~85% of HBM roofline; double-buffered it stays far
    inside v7x's 64 MiB VMEM), capped at ceil(B/2) so the grid has >= 2 steps and
    v7x's two TensorCores can both pull from HBM.
    """
    row_bytes = max(1, C * S * itemsize)
    tb = max(1, (2 * 1024 * 1024) // row_bytes)
    tb = min(tb, (B + 1) // 2 if B >= 2 else 1)
    return int(max(1, min(tb, B)))


def ad_block_forward(x_nchw, params, *, rng_key=None, training=True):
    """x_nchw: (B, C, H, W) float32 or bfloat16.  Returns (B, out_channel, 1, 1) f32."""
    B, C, H, W = x_nchw.shape
    # F.avg_pool2d(input, input.shape[3]) only reduces the whole map when H == W.
    assert H == W, "AD_Block's avg_pool2d(input, W) assumes square spatial dims"
    S = H * W

    w1, b1, w2, b2 = params
    hid = w1.shape[1]
    out_ch = w2.shape[1]
    pad = _round_up(max(hid, out_ch, 1), LANE)

    x3 = x_nchw.reshape(B, C, S)                 # contiguous reshape: no HBM pass
    tb = _choose_tb(B, C, S, x3.dtype.itemsize)
    nb = int(pl.cdiv(B, tb))
    b_pad = nb * tb

    if training:
        assert rng_key is not None, "training forward needs an rng_key"
        k_noise, k_idx = jax.random.split(rng_key)
        noise = jax.random.normal(k_noise, (B, out_ch), jnp.float32)   # torch.randn
        # semhash: randint(0, out_ch, size=out_ch//2) -> 0/1 column mask (dups collapse)
        idx = jax.random.randint(k_idx, (out_ch // 2,), 0, out_ch)
        col_mask = jnp.zeros((out_ch,), jnp.float32).at[idx].set(1.0)
    else:
        noise = None
        col_mask = jnp.zeros((out_ch,), jnp.float32)   # unused on the eval path

    # fold the 1/S average-pool scale into w1 offline (pool becomes a plain sum)
    packed = _pack_params(w1 / float(S), b1, w2, b2, col_mask, pad)

    x_spec = pl.BlockSpec((tb, C, S), lambda b: (b, 0, 0))          # TB batch rows / step
    p_spec = pl.BlockSpec((pad + C + 3, pad), lambda b: (0, 0),
                          pipeline_mode=pl.Buffered(1))             # constant -> 1 buffer
    row_spec = pl.BlockSpec((None, tb, pad), lambda b: (b, 0, 0))   # lane-dense (TB, pad)

    vmem_needed = (2 * tb * C * S * x3.dtype.itemsize               # x double-buffer
                   + (pad + C + 3) * pad * 4                        # packed params (1 buf)
                   + 4 * 2 * tb * pad * 4                           # noise + out buffers
                   + tb * C * S * 4                                 # f32 upcast temps
                   + (4 << 20))                                     # headroom
    cparams = pltpu.CompilerParams(
        dimension_semantics=("parallel",),       # split the batch grid across v7x's 2 TCs
        vmem_limit_bytes=int(min(max(vmem_needed, 16 << 20), 48 << 20)),
    )

    cost = pl.CostEstimate(
        flops=int(2 * B * (C * pad + pad * pad) + B * C * S),
        transcendentals=int(B * pad),
        bytes_accessed=int(x3.size * x3.dtype.itemsize + packed.size * 4
                           + (2 if training else 1) * b_pad * pad * 4),
    )

    if training:
        noise_p = (jnp.zeros((b_pad, pad), jnp.float32)
                   .at[:B, :out_ch].set(noise)
                   .reshape(nb, tb, pad))
        out3 = pl.pallas_call(
            functools.partial(ad_block_train_kernel, C=C, PAD=pad),
            out_shape=jax.ShapeDtypeStruct((nb, tb, pad), jnp.float32),
            grid=(nb,),
            in_specs=[x_spec, p_spec, row_spec],
            out_specs=row_spec,
            compiler_params=cparams,
            cost_estimate=cost,
        )(x3, packed, noise_p)
    else:
        out3 = pl.pallas_call(
            functools.partial(ad_block_eval_kernel, C=C, PAD=pad),
            out_shape=jax.ShapeDtypeStruct((nb, tb, pad), jnp.float32),
            grid=(nb,),
            in_specs=[x_spec, p_spec],
            out_specs=row_spec,
            compiler_params=cparams,
            cost_estimate=cost,
        )(x3, packed)

    # drop batch & lane padding, then predict_bin.unsqueeze(2).unsqueeze(3)
    return out3.reshape(b_pad, pad)[:B, :out_ch].reshape(B, out_ch, 1, 1)


def make_params(key, in_channel, out_channel, T=4):
    """Deterministic parameter init mirroring AD_Block.__init__."""
    hidden = in_channel // T
    w1 = jnp.zeros((in_channel, hidden), jnp.float32)   # fc1.weight = 0 (stored (in, hid))
    b1 = jnp.ones((hidden,), jnp.float32)               # fc1.bias = 1
    std = (2.0 / hidden) ** 0.5                         # kaiming_normal, fan_in = hidden
    w2 = std * jax.random.normal(key, (hidden, out_channel), jnp.float32)
    b2 = jnp.ones((out_channel,), jnp.float32)          # fc2.bias = 1
    # TODO(synk): fc_class (only used by cforward, not forward()) is omitted here.
    return (w1, b1, w2, b2)


if __name__ == "__main__":
    key = jax.random.PRNGKey(0)
    k_in, k_par, k_fwd = jax.random.split(key, 3)

    B, in_channel, H, W = 2, 8, 16, 16
    out_channel, T = 8, 4

    x = jax.random.normal(k_in, (B, in_channel, H, W), jnp.float32)
    params = make_params(k_par, in_channel, out_channel, T)

    # training path (module default: self.training = True)
    out_train = ad_block_forward(x, params, rng_key=k_fwd, training=True)
    jax.block_until_ready(out_train)
    assert out_train.shape == (B, out_channel, 1, 1)
    assert bool(jnp.all((out_train >= 0.0) & (out_train <= 1.0)))

    # eval path: (y > 0).float()
    out_eval = ad_block_forward(x, params, training=False)
    jax.block_until_ready(out_eval)
    assert out_eval.shape == (B, out_channel, 1, 1)
    assert bool(jnp.all((out_eval == 0.0) | (out_eval == 1.0)))

    # bf16 activations accepted directly (kernel upcasts after load; halves the x DMA).
    out_bf16 = ad_block_forward(x.astype(jnp.bfloat16), params, rng_key=k_fwd, training=True)
    jax.block_until_ready(out_bf16)
    assert out_bf16.shape == (B, out_channel, 1, 1)

    print("KERNEL_OK")
</pallas_src>

<mosaic_0001>
module attributes {stable_mosaic.version = 11 : i64} {
  func.func @ad_block_train_kernel(%arg0: i32, %arg1: memref<1x8x256xf32, #tpu.memory_space<vmem>>, %arg2: memref<139x128xf32, #tpu.memory_space<vmem>>, %arg3: memref<1x1x128xf32, #tpu.memory_space<vmem>>, %arg4: memref<1x1x128xf32, #tpu.memory_space<vmem>>) attributes {dimension_semantics = [#tpu.dimension_semantics<parallel>], iteration_bounds = array<i64: 2>, scalar_prefetch = 0 : i64, scratch_operands = 0 : i64, tpu.core_type = #tpu.core_type<tc>, window_params = [{transform_indices = @transform_0, window_bounds = array<i64: 1, 8, 256>}, {pipeline_mode = #tpu.pipeline_mode<synchronous>, transform_indices = @transform_1, window_bounds = array<i64: 139, 128>}, {transform_indices = @transform_2, window_bounds = array<i64: 1, 1, 128>}, {transform_indices = @transform_3, window_bounds = array<i64: 1, 1, 128>}]} {
    %c0 = arith.constant 0 : index
    %c0_0 = arith.constant 0 : index
    %c0_1 = arith.constant 0 : index
    %0 = vector.load %arg1[%c0, %c0_0, %c0_1] : memref<1x8x256xf32, #tpu.memory_space<vmem>>, vector<1x8x256xf32>
    %cst = arith.constant dense<0.000000e+00> : vector<1x8xf32>
    %1 = vector.multi_reduction <add>, %0, %cst [2] : vector<1x8x256xf32> to vector<1x8xf32>
    %c0_2 = arith.constant 0 : index
    %c0_3 = arith.constant 0 : index
    %2 = vector.load %arg2[%c0_2, %c0_3] : memref<139x128xf32, #tpu.memory_space<vmem>>, vector<128x128xf32>
    %c128 = arith.constant 128 : index
    %c0_4 = arith.constant 0 : index
    %3 = vector.load %arg2[%c128, %c0_4] : memref<139x128xf32, #tpu.memory_space<vmem>>, vector<8x128xf32>
    %c136 = arith.constant 136 : index
    %c0_5 = arith.constant 0 : index
    %4 = vector.load %arg2[%c136, %c0_5] : memref<139x128xf32, #tpu.memory_space<vmem>>, vector<1x128xf32>
    %c137 = arith.constant 137 : index
    %c0_6 = arith.constant 0 : index
    %5 = vector.load %arg2[%c137, %c0_6] : memref<139x128xf32, #tpu.memory_space<vmem>>, vector<1x128xf32>
    %cst_7 = arith.constant dense<0.000000e+00> : vector<1x128xf32>
    %6 = tpu.matmul %1, %3, %cst_7 {dimension_numbers = #tpu.dot_dimension_numbers<[1], [0], [0], [1], [0, 0, 1, 1], [], []>} : vector<1x8xf32>, vector<8x128xf32>, vector<1x128xf32> -> vector<1x128xf32>
    %7 = arith.addf %6, %4 : vector<1x128xf32>
    %cst_8 = arith.constant 0.000000e+00 : f32
    %8 = vector.broadcast %cst_8 : f32 to vector<1x128xf32>
    %9 = arith.maximumf %7, %8 : vector<1x128xf32>
    %10 = arith.truncf %9 : vector<1x128xf32> to vector<1x128xbf16>
    %11 = arith.truncf %2 : vector<128x128xf32> to vector<128x128xbf16>
    %cst_9 = arith.constant dense<0.000000e+00> : vector<1x128xf32>
    %12 = tpu.matmul %10, %11, %cst_9 {dimension_numbers = #tpu.dot_dimension_numbers<[1], [0], [0], [1], [0, 0, 1, 1], [], []>} : vector<1x128xbf16>, vector<128x128xbf16>, vector<1x128xf32> -> vector<1x128xf32>
    %13 = arith.addf %12, %5 : vector<1x128xf32>
    %c0_10 = arith.constant 0 : index
    %c0_11 = arith.constant 0 : index
    %c0_12 = arith.constant 0 : index
    %14 = vector.load %arg3[%c0_10, %c0_11, %c0_12] : memref<1x1x128xf32, #tpu.memory_space<vmem>>, vector<1x1x128xf32>
    %15 = vector.shape_cast %14 : vector<1x1x128xf32> to vector<1x128xf32>
    %16 = arith.addf %15, %13 : vector<1x128xf32>
    %cst_13 = arith.constant 0.000000e+00 : f32
    %17 = vector.broadcast %cst_13 : f32 to vector<1x128xf32>
    %18 = arith.subf %17, %16 : vector<1x128xf32>
    %19 = math.exp %18 : vector<1x128xf32>
    %cst_14 = arith.constant 1.000000e+00 : f32
    %20 = vector.broadcast %cst_14 : f32 to vector<1x128xf32>
    %21 = arith.addf %20, %19 : vector<1x128xf32>
    %22 = tpu.reciprocal %21 {approx = true} : vector<1x128xf32> -> vector<1x128xf32>
    %cst_15 = arith.constant 1.200000e+00 : f32
    %23 = vector.broadcast %cst_15 : f32 to vector<1x128xf32>
    %24 = arith.mulf %23, %22 : vector<1x128xf32>
    %cst_16 = arith.constant 1.000000e-01 : f32
    %25 = vector.broadcast %cst_16 : f32 to vector<1x128xf32>
    %26 = arith.subf %24, %25 : vector<1x128xf32>
    %cst_17 = arith.constant 0.000000e+00 : f32
    %cst_18 = arith.constant 1.000000e+00 : f32
    %27 = vector.broadcast %cst_17 : f32 to vector<1x128xf32>
    %28 = arith.maximumf %27, %26 : vector<1x128xf32>
    %29 = vector.broadcast %cst_18 : f32 to vector<1x128xf32>
    %30 = arith.minimumf %29, %28 : vector<1x128xf32>
    %cst_19 = arith.constant 0.000000e+00 : f32
    %31 = vector.broadcast %cst_19 : f32 to vector<1x128xf32>
    %32 = arith.cmpf ogt, %16, %31 : vector<1x128xf32>
    %33 = arith.extui %32 : vector<1x128xi1> to vector<1x128xi32>
    %34 = arith.sitofp %33 : vector<1x128xi32> to vector<1x128xf32>
    %c138 = arith.constant 138 : index
    %c0_20 = arith.constant 0 : index
    %35 = vector.load %arg2[%c138, %c0_20] : memref<139x128xf32, #tpu.memory_space<vmem>>, vector<1x128xf32>
    %cst_21 = arith.constant 5.000000e-01 : f32
    %36 = vector.broadcast %cst_21 : f32 to vector<1x128xf32>
    %37 = arith.cmpf ogt, %35, %36 : vector<1x128xf32>
    %38 = arith.select %37, %34, %30 : vector<1x128xi1>, vector<1x128xf32>
    %c0_22 = arith.constant 0 : index
    %c0_23 = arith.constant 0 : index
    %c0_24 = arith.constant 0 : index
    %39 = vector.load %arg4[%c0_22, %c0_23, %c0_24] : memref<1x1x128xf32, #tpu.memory_space<vmem>>, vector<1x1x128xf32>
    %40 = vector.shape_cast %39 : vector<1x1x128xf32> to vector<1x128xf32>
    %41 = vector.shape_cast %38 : vector<1x128xf32> to vector<1x1x128xf32>
    tpu.vector_store %arg4[%c0_22, %c0_23, %c0_24], %41 {strides = array<i32>} : memref<1x1x128xf32, #tpu.memory_space<vmem>>, vector<1x1x128xf32>,
    return
  }
  func.func @transform_0(%arg0: i32) -> (i32, i32, i32) {
    %c0_i32 = arith.constant 0 : i32
    %c0_i32_0 = arith.constant 0 : i32
    %c0_i32_1 = arith.constant 0 : i32
    return %arg0, %c0_i32, %c0_i32_0 : i32, i32, i32
  }
  func.func @transform_1(%arg0: i32) -> (i32, i32) {
    %c0_i32 = arith.constant 0 : i32
    %c0_i32_0 = arith.constant 0 : i32
    %c0_i32_1 = arith.constant 0 : i32
    return %c0_i32, %c0_i32_0 : i32, i32
  }
  func.func @transform_2(%arg0: i32) -> (i32, i32, i32) {
    %c0_i32 = arith.constant 0 : i32
    %c0_i32_0 = arith.constant 0 : i32
    %c0_i32_1 = arith.constant 0 : i32
    return %arg0, %c0_i32, %c0_i32_0 : i32, i32, i32
  }
  func.func @transform_3(%arg0: i32) -> (i32, i32, i32) {
    %c0_i32 = arith.constant 0 : i32
    %c0_i32_0 = arith.constant 0 : i32
    %c0_i32_1 = arith.constant 0 : i32
    return %arg0, %c0_i32, %c0_i32_0 : i32, i32, i32
  }
}

</mosaic_0001>

<llo_original>
// kernel: tpu_custom_call.1
$region0: #{tpu_custom_call.1}
  #allocation0 [shape = 'u32[]', space=smem, size = 0x4, offset = 0x4, fixed_abs, tag = 'smem constant byte address 0x4 - core index']
  #allocation1 [shape = 'u32[144,128]{1,0:T(1,128)}', space=vmem, size = 0x12000, scoped, tag = 'internal scratch']
  %s0 = inlined_call_operand.hbm [shape: f32[2,8,256], index: 0, kind: input, shape index: {}]
  %s1 = inlined_call_operand.hbm [shape: f32[139,128], index: 1, kind: input, shape index: {}]
  %s2 = inlined_call_operand.vmem [shape: f32[2,1,128], index: 2, kind: input, shape index: {}]
  %s3 = inlined_call_operand.hbm [shape: f32[2,1,128], index: 3, kind: output, shape index: {}]
  %s4 = sld [smem:[#allocation0]]
  $region53: #{tpu_custom_call.1} parent=0
    _
  %s6 = ssub.s32 1, %s4
  %s7 = scalar_select 0, %s6, %s4
  $region1: #{tpu_custom_call.1} parent=0
    #allocation2 [shape = 'u8[16384]{0}', space=vmem, size = 0x4000, scoped, tag = 'input window, operand 0']
    #allocation3 [shape = 's32[2]{0}', space=sflag, size = 0x8, scoped, tag = 'scoped memory for tpu_custom_call.1']
    #allocation4 [shape = 's32[2]{0}', space=sflag, size = 0x8, scoped, tag = 'scoped memory for tpu_custom_call.1']
    #allocation5 [shape = 'u8[73728]{0}', space=vmem, size = 0x12000, scoped, tag = 'input window, operand 1, single buffered']
    #allocation6 [shape = 's32[1]{0}', space=sflag, size = 0x4, scoped, tag = 'scoped memory for tpu_custom_call.1']
    #allocation7 [shape = 'u8[1024]{0}', space=vmem, size = 0x400, scoped, tag = 'output window, operand 0']
    %8 = vsyncpa [#allocation3], 0
    %s9 = scalar_lea.sflag [#allocation3], 1
    %10 = vsyncpa %s9, 0
    %11 = vsyncpa [#allocation6], 0
    %12 = vsyncpa [#allocation4], 0
    %s13 = scalar_lea.sflag [#allocation4], 1
    %14 = vsyncpa %s13, 0
    loop: start=0, step=1, limit=4
    $region2: #{tpu_custom_call.1} parent=1 // loop_pre_header
      _
    $region3: #{tpu_custom_call.1} parent=1 // loop_header
      %s16 = sphi 0, %s20
      %p17 = scmp.ge.s32.totalorder %s16, 4
      %s26 = sphi 0, %s28
      %s29 = sphi 0, %s26
      %s30 = sphi 0, %s29
      %s46 = sphi 0, %s30
      %s50 = sphi 0, %s50
      %s52 = sphi 0, %s50
      %s53 = sphi 0, %s52
      %s67 = sphi 0, %s53
      %s73 = sphi 0, %s75
      %s76 = sphi 0, %s73
      %s77 = sphi 0, %s76
      %s93 = sphi 0, %s77
      %s99 = sphi 0, %s101
      %s102 = sphi 0, %s99
      %s103 = sphi 0, %s102
      %s119 = sphi 0, %s103
    $region4: #{tpu_custom_call.1} parent=1 // loop_header_branch
      %19 = sbr.rel (%p17) target = $region8
    $region5: #{tpu_custom_call.1} parent=1 // loop_body
      %s21 = ssub.s32 %s16, 1
      %s22 = ssub.s32 %s16, 2
      %s23 = sadd.s32 %s16, 1
      %s24 = ssub.s32 %s16, %s23
      %p25 = scmp.eq.s32.totalorder %s24, 0
      %s27 = sadd.s32 %s26, 1
      %s28 = scalar_select %p25, %s26, %s27
      %p31 = pneg %p25
      %p32 = scmp.eq.s32.totalorder %s16, 1
      %p33 = por %p31, %p32
      %p34 = scmp.ne.s32.totalorder %s26, %s29
      %p35 = scmp.eq.s32.totalorder %s16, 0
      %p36 = por %p34, %p35
      %p37 = scmp.ne.s32.totalorder %s26, %s29
      %p38 = scmp.eq.s32.totalorder %s21, 1
      %p39 = por %p37, %p38
      %p40 = scmp.ne.s32.totalorder %s29, %s30
      %p41 = scmp.eq.s32.totalorder %s21, 0
      %p42 = por %p40, %p41
      %p43 = scmp.ne.s32.totalorder %s29, %s30
      %p44 = scmp.eq.s32.totalorder %s22, 1
      %p45 = por %p43, %p44
      %p47 = scmp.ne.s32.totalorder %s30, %s46
      %p48 = scmp.eq.s32.totalorder %s22, 0
      %p49 = por %p47, %p48
      %s51 = sadd.s32 %s50, 1
      %p54 = scmp.eq.s32.totalorder %s16, 1
      %p55 = scmp.ne.s32.totalorder %s50, %s52
      %p56 = scmp.eq.s32.totalorder %s16, 0
      %p57 = por %p55, %p56
      %p58 = scmp.ne.s32.totalorder %s50, %s52
      %p59 = scmp.eq.s32.totalorder %s21, 1
      %p60 = por %p58, %p59
      %p61 = scmp.ne.s32.totalorder %s52, %s53
      %p62 = scmp.eq.s32.totalorder %s21, 0
      %p63 = por %p61, %p62
      %p64 = scmp.ne.s32.totalorder %s52, %s53
      %p65 = scmp.eq.s32.totalorder %s22, 1
      %p66 = por %p64, %p65
      %p68 = scmp.ne.s32.totalorder %s53, %s67
      %p69 = scmp.eq.s32.totalorder %s22, 0
      %p70 = por %p68, %p69
      %s71 = ssub.s32 %s16, %s23
      %p72 = scmp.eq.s32.totalorder %s71, 0
      %s74 = sadd.s32 %s73, 1
      %s75 = scalar_select %p72, %s73, %s74
      %p78 = pneg %p72
      %p79 = scmp.eq.s32.totalorder %s16, 1
      %p80 = por %p78, %p79
      %p81 = scmp.ne.s32.totalorder %s73, %s76
      %p82 = scmp.eq.s32.totalorder %s16, 0
      %p83 = por %p81, %p82
      %p84 = scmp.ne.s32.totalorder %s73, %s76
      %p85 = scmp.eq.s32.totalorder %s21, 1
      %p86 = por %p84, %p85
      %p87 = scmp.ne.s32.totalorder %s76, %s77
      %p88 = scmp.eq.s32.totalorder %s21, 0
      %p89 = por %p87, %p88
      %p90 = scmp.ne.s32.totalorder %s76, %s77
      %p91 = scmp.eq.s32.totalorder %s22, 1
      %p92 = por %p90, %p91
      %p94 = scmp.ne.s32.totalorder %s77, %s93
      %p95 = scmp.eq.s32.totalorder %s22, 0
      %p96 = por %p94, %p95
      %s97 = ssub.s32 %s16, %s23
      %p98 = scmp.eq.s32.totalorder %s97, 0
      %s100 = sadd.s32 %s99, 1
      %s101 = scalar_select %p98, %s99, %s100
      %p104 = pneg %p98
      %p105 = scmp.eq.s32.totalorder %s16, 1
      %p106 = por %p104, %p105
      %p107 = scmp.ne.s32.totalorder %s99, %s102
      %p108 = scmp.eq.s32.totalorder %s16, 0
      %p109 = por %p107, %p108
      %p110 = scmp.ne.s32.totalorder %s99, %s102
      %p111 = scmp.eq.s32.totalorder %s21, 1
      %p112 = por %p110, %p111
      %p113 = scmp.ne.s32.totalorder %s102, %s103
      %p114 = scmp.eq.s32.totalorder %s21, 0
      %p115 = por %p113, %p114
      %p116 = scmp.ne.s32.totalorder %s102, %s103
      %p117 = scmp.eq.s32.totalorder %s22, 1
      %p118 = por %p116, %p117
      %p120 = scmp.ne.s32.totalorder %s103, %s119
      %p121 = scmp.eq.s32.totalorder %s22, 0
      %p122 = por %p120, %p121
      %p123 = scmp.le.s32.totalorder 1, %s16
      %p124 = scmp.lt.s32.totalorder %s16, 3
      %p125 = pnand %p123, %p124
      %p126 = pneg %p125
      // Predicated region
      $region9: #{tpu_custom_call.1} parent=5 // pred_check
        _
      $region10: #{tpu_custom_call.1} parent=5 // pred_check_branch
        %128 = sbr.rel (%p125) target = $region12
      $region11: #{tpu_custom_call.1} parent=5 // pred_region
        %s129 = ssub.s32 %s16, 1
        // Predicated region
        $region13: #{tpu_custom_call.1} parent=11 // pred_check
          %p130 = pneg %p63
        $region14: #{tpu_custom_call.1} parent=11 // pred_check_branch
          %132 = sbr.rel (%p130) target = $region16
        $region15: #{tpu_custom_call.1} parent=11 // pred_region
          %s134 = ssub.s32 2304, 2304
          %135 = vsyncadd [#allocation6], %s134
          %s136 = sshll.u32 [#allocation5], 4
          %s137 = int_to_ptr.vmem [resolvable:$true] %s136
          %142 = dma.hbm_to_vmem [thread:$0]  %s1, 2304, %s137, [#allocation6], 128, 128, 8
        $region16: #{tpu_custom_call.1} parent=11 // pred_fallthru
          _
      $region12: #{tpu_custom_call.1} parent=5 // pred_fallthru
        _
      %p143 = scmp.lt.s32.totalorder %s16, 2
      // Predicated region
      $region17: #{tpu_custom_call.1} parent=5 // pred_check
        %p144 = pneg %p143
      $region18: #{tpu_custom_call.1} parent=5 // pred_check_branch
        %146 = sbr.rel (%p144) target = $region20
      $region19: #{tpu_custom_call.1} parent=5 // pred_region
        // Predicated region
        $region21: #{tpu_custom_call.1} parent=19 // pred_check
          %p147 = pneg %p36
        $region22: #{tpu_custom_call.1} parent=19 // pred_check_branch
          %149 = sbr.rel (%p147) target = $region24
        $region23: #{tpu_custom_call.1} parent=19 // pred_region
          %s150 = sand.u32 %s26, 1
          %s151 = scalar_lea.sflag [#allocation3], %s150
          %s152 = sand.u32 %s26, 1
          %s153 = smul.addr %s152, 16
          %s154 = scalar_lea.vmem [#allocation2], %s153
          %s156 = ssub.s32 256, 256
          %157 = vsyncadd %s151, %s156
          %s158 = smul.addr %s16, 2
          %s159 = smul.addr %s158, 128
          %s160 = scalar_lea.hbm %s0, %s159
          %s162 = sshll.u32 %s154, 4
          %s163 = int_to_ptr.vmem [resolvable:$true] %s162
          %165 = dma.hbm_to_vmem [thread:$0]  %s160, 256, %s163, %s151
        $region24: #{tpu_custom_call.1} parent=19 // pred_fallthru
          _
        // Predicated region
        $region25: #{tpu_custom_call.1} parent=19 // pred_check
          %p166 = pneg %p83
        $region26: #{tpu_custom_call.1} parent=19 // pred_check_branch
          %168 = sbr.rel (%p166) target = $region28
        $region27: #{tpu_custom_call.1} parent=19 // pred_region
          %p169 = scmp.lt.s32.totalorder %s16, 1
          %s170 = scalar_select %p169, %s16, 1
          %s171 = scalar_lea.vmem %s2, %s170
        $region28: #{tpu_custom_call.1} parent=19 // pred_fallthru
          _
      $region20: #{tpu_custom_call.1} parent=5 // pred_fallthru
        _
      %p172 = scmp.le.s32.totalorder 1, %s16
      %p173 = scmp.lt.s32.totalorder %s16, 3
      %p174 = pnand %p172, %p173
      %p175 = pneg %p174
      // Predicated region
      $region29: #{tpu_custom_call.1} parent=5 // pred_check
        _
      $region30: #{tpu_custom_call.1} parent=5 // pred_check_branch
        %177 = sbr.rel (%p174) target = $region32
      $region31: #{tpu_custom_call.1} parent=5 // pred_region
        %s178 = ssub.s32 %s16, 1
        %s179 = sand.u32 %s29, 1
        %s180 = scalar_lea.sflag [#allocation3], %s179
        %s181 = sand.u32 %s29, 1
        %s182 = smul.addr %s181, 16
        %s183 = scalar_lea.vmem [#allocation2], %s182
        // Predicated region
        $region33: #{tpu_custom_call.1} parent=31 // pred_check
          %p184 = pneg %p42
        $region34: #{tpu_custom_call.1} parent=31 // pred_check_branch
          %186 = sbr.rel (%p184) target = $region36
        $region35: #{tpu_custom_call.1} parent=31 // pred_region
          %187 = dma.done %s180, 256
        $region36: #{tpu_custom_call.1} parent=31 // pred_fallthru
          _
        // Predicated region
        $region37: #{tpu_custom_call.1} parent=31 // pred_check
          %p188 = pneg %p63
        $region38: #{tpu_custom_call.1} parent=31 // pred_check_branch
          %190 = sbr.rel (%p188) target = $region40
        $region39: #{tpu_custom_call.1} parent=31 // pred_region
          %191 = dma.done [#allocation6], 2304
        $region40: #{tpu_custom_call.1} parent=31 // pred_fallthru
          _
        %s192 = sand.u32 %s29, 1
        %s193 = scalar_lea.sflag [#allocation3], %s192
        %s194 = sand.u32 %s29, 1
        %s195 = smul.addr %s194, 16
        %s196 = scalar_lea.vmem [#allocation2], %s195
        %p197 = pneg %p42
        %p198 = pneg %p39
        %p199 = pneg %p63
        %p200 = pneg %p60
        %p201 = scmp.lt.s32.totalorder %s21, 1
        %s202 = scalar_select %p201, %s21, 1
        %s203 = scalar_lea.vmem %s2, %s202
        %p204 = pneg %p89
        %p205 = pneg %p86
        %p206 = pneg %p115
        %p207 = pneg %p112
        %s208 = sand.u32 %s102, 1
        %s209 = scalar_lea.sflag [#allocation4], %s208
        %s210 = sand.u32 %s102, 1
        %s211 = scalar_lea.vmem [#allocation7], %s210
        %p212 = scmp.lt.s32.totalorder %s21, 1
        %s213 = scalar_select %p212, %s21, 1
        %s214 = scalar_lea.vmem %s2, %s213
        %v216 = vld [vmem:[%s183] sm:$0xff]
        %v217 = vld [vmem:[%s183 + $0x8] sm:$0xff]
        %v218 = vadd.f32 %v216, %v217
        %219 = vadd.xlane.f32.xlu0 %v218
        %v220 = vpop.xlane.xlu0 %219
        %v221 = vld [vmem:[#allocation5] sm:$0xff]
        %v222 = vld [vmem:[#allocation5 + $0x8] sm:$0xff]
        %v223 = vld [vmem:[#allocation5 + $0x10] sm:$0xff]
        %v224 = vld [vmem:[#allocation5 + $0x18] sm:$0xff]
        %v225 = vld [vmem:[#allocation5 + $0x20] sm:$0xff]
        %v226 = vld [vmem:[#allocation5 + $0x28] sm:$0xff]
        %v227 = vld [vmem:[#allocation5 + $0x30] sm:$0xff]
        %v228 = vld [vmem:[#allocation5 + $0x38] sm:$0xff]
        %v229 = vld [vmem:[#allocation5 + $0x40] sm:$0xff]
        %v230 = vld [vmem:[#allocation5 + $0x48] sm:$0xff]
        %v231 = vld [vmem:[#allocation5 + $0x50] sm:$0xff]
        %v232 = vld [vmem:[#allocation5 + $0x58] sm:$0xff]
        %v233 = vld [vmem:[#allocation5 + $0x60] sm:$0xff]
        %v234 = vld [vmem:[#allocation5 + $0x68] sm:$0xff]
        %v235 = vld [vmem:[#allocation5 + $0x70] sm:$0xff]
        %v236 = vld [vmem:[#allocation5 + $0x78] sm:$0xff]
        %v237 = vld [vmem:[#allocation5 + $0x80] sm:$0xff]
        %v238 = vld [vmem:[#allocation5 + $0x88] sm:$0x1]
        %v239 = vld [vmem:[#allocation5 + $0x89] sm:$0x1]
        %v241 = vlaneseq
        %v242 = vand.u32 %v241, 127
        %v243 = vlaneseq
        %v244 = vshrl.u32 %v243, 7
        %v245 = vsub.s32 %v242, %v244
        %v246 = vrot.slane %v220, %v245
        %vm247 = vcmask 64512
        %v248 = vsel %vm247, %v246, 0
        %250 = vmatprep.subr.mxu0 0.0
        %251 = vmatpush1.msra.mxu0 0.0
        %252 = vmatprep.subr.mxu0 0.0
        %253 = vmatpush1.msra.mxu0 0.0
        %254 = vmatprep.subr.mxu0 0.0
        %255 = vmatpush1.msra.mxu0 0.0
        %256 = vmatprep.subr.mxu0 0.0
        %257 = vmatpush1.msra.mxu0 0.0
        %258 = vmatprep.subr.mxu0 0.0
        %259 = vmatpush1.msra.mxu0 0.0
        %260 = vmatprep.subr.mxu0 0.0
        %261 = vmatpush1.msra.mxu0 0.0
        %262 = vmatprep.subr.mxu0 0.0
        %263 = vmatpush1.msra.mxu0 0.0
        %264 = vmatprep.subr.mxu0 0.0
        %265 = vmatpush1.msra.mxu0 0.0
        %266 = vmatprep.subr.mxu0 0.0
        %267 = vmatpush1.msra.mxu0 0.0
        %268 = vmatprep.subr.mxu0 0.0
        %269 = vmatpush1.msra.mxu0 0.0
        %270 = vmatprep.subr.mxu0 0.0
        %271 = vmatpush1.msra.mxu0 0.0
        %272 = vmatprep.subr.mxu0 0.0
        %273 = vmatpush1.msra.mxu0 0.0
        %274 = vmatprep.subr.mxu0 0.0
        %275 = vmatpush1.msra.mxu0 0.0
        %276 = vmatprep.subr.mxu0 0.0
        %277 = vmatpush1.msra.mxu0 0.0
        %278 = vmatprep.subr.mxu0 0.0
        %279 = vmatpush1.msra.mxu0 0.0
        %280 = vmatprep.subr.mxu0 0.0
        %281 = vmatpush1.msra.mxu0 %v237
        %282 = vmatprep.subr.mxu0 0.0
        %283 = vmatpush2.msra.mxu0 0.0
        %284 = vmatprep.subr.mxu0 0.0
        %285 = vmatpush2.msra.mxu0 0.0
        %286 = vmatprep.subr.mxu0 0.0
        %287 = vmatpush2.msra.mxu0 0.0
        %288 = vmatprep.subr.mxu0 0.0
        %289 = vmatpush2.msra.mxu0 0.0
        %290 = vmatprep.subr.mxu0 0.0
        %291 = vmatpush2.msra.mxu0 0.0
        %292 = vmatprep.subr.mxu0 0.0
        %293 = vmatpush2.msra.mxu0 0.0
        %294 = vmatprep.subr.mxu0 0.0
        %295 = vmatpush2.msra.mxu0 0.0
        %296 = vmatprep.subr.mxu0 0.0
        %297 = vmatpush2.msra.mxu0 0.0
        %298 = vmatprep.subr.mxu0 0.0
        %299 = vmatpush2.msra.mxu0 0.0
        %300 = vmatprep.subr.mxu0 0.0
        %301 = vmatpush2.msra.mxu0 0.0
        %302 = vmatprep.subr.mxu0 0.0
        %303 = vmatpush2.msra.mxu0 0.0
        %304 = vmatprep.subr.mxu0 0.0
        %305 = vmatpush2.msra.mxu0 0.0
        %306 = vmatprep.subr.mxu0 0.0
        %307 = vmatpush2.msra.mxu0 0.0
        %308 = vmatprep.subr.mxu0 0.0
        %309 = vmatpush2.msra.mxu0 0.0
        %310 = vmatprep.subr.mxu0 0.0
        %311 = vmatpush2.msra.mxu0 0.0
        %312 = vmatprep.subr.mxu0 0.0
        %313 = vmatpush2.msra.mxu0 0.0
        %314 = vmatprep.mubr.f32.mxu0 0.0
        %315 = vmatmul.mubr.f32.gmra.mxu0 %v248
        %v316 = vpop.f32.mrf.mxu0
        %v317 = vadd.f32 %v238, %v316
        %v318 = vpop.f32.mrf.mxu0
        %319 = vdwg.mxu0
        %v320 = vmax.f32 %v317, 0.0
        %v321 = vpack.c.bf16 %v320, %v320
        %v322 = vpack.c.bf16 %v222, %v221
        %v323 = vpack.c.bf16 %v224, %v223
        %v324 = vpack.c.bf16 %v226, %v225
        %v325 = vpack.c.bf16 %v228, %v227
        %v326 = vpack.c.bf16 %v230, %v229
        %v327 = vpack.c.bf16 %v232, %v231
        %v328 = vpack.c.bf16 %v234, %v233
        %v329 = vpack.c.bf16 %v236, %v235
        %330 = vmatprep.subr.bf16.mxu0 0
        %331 = vmatpush1.bf16.msra.mxu0 %v329
        %332 = vmatprep.subr.bf16.mxu0 0
        %333 = vmatpush1.bf16.msra.mxu0 %v328
        %334 = vmatprep.subr.bf16.mxu0 0
        %335 = vmatpush1.bf16.msra.mxu0 %v327
        %336 = vmatprep.subr.bf16.mxu0 0
        %337 = vmatpush1.bf16.msra.mxu0 %v326
        %338 = vmatprep.subr.bf16.mxu0 0
        %339 = vmatpush1.bf16.msra.mxu0 %v325
        %340 = vmatprep.subr.bf16.mxu0 0
        %341 = vmatpush1.bf16.msra.mxu0 %v324
        %342 = vmatprep.subr.bf16.mxu0 0
        %343 = vmatpush1.bf16.msra.mxu0 %v323
        %344 = vmatprep.subr.bf16.mxu0 0
        %345 = vmatpush1.bf16.msra.mxu0 %v322
        %346 = vmatprep.subr.bf16.mxu0 0
        %347 = vmatpush2.bf16.msra.mxu0 0
        %348 = vmatprep.subr.bf16.mxu0 0
        %349 = vmatpush2.bf16.msra.mxu0 0
        %350 = vmatprep.subr.bf16.mxu0 0
        %351 = vmatpush2.bf16.msra.mxu0 0
        %352 = vmatprep.subr.bf16.mxu0 0
        %353 = vmatpush2.bf16.msra.mxu0 0
        %354 = vmatprep.subr.bf16.mxu0 0
        %355 = vmatpush2.bf16.msra.mxu0 0
        %356 = vmatprep.subr.bf16.mxu0 0
        %357 = vmatpush2.bf16.msra.mxu0 0
        %358 = vmatprep.subr.bf16.mxu0 0
        %359 = vmatpush2.bf16.msra.mxu0 0
        %360 = vmatprep.subr.bf16.mxu0 0
        %361 = vmatpush2.bf16.msra.mxu0 0
        %362 = vmatprep.mubr.bf16.mxu0 0
        %363 = vmatmul.mubr.bf16.gmra.mxu0 %v321
        %v364 = vpop.f32.mrf.mxu0
        %v365 = vadd.f32 %v239, %v364
        %v366 = vpop.f32.mrf.mxu0
        %v367 = vpop.f32.mrf.mxu0
        %v368 = vpop.f32.mrf.mxu0
        %369 = vdwg.mxu0
        %v370 = vld [vmem:[%s214] sm:$0x1]
        %v371 = vadd.f32 %v370, %v365
        %v372 = vsub.f32 0.0, %v371
        %v373 = vmul.f32 %v372, 1.442695
        %v374 = vpow.pop %v373
        %v375 = vadd.f32 %v374, 1.0
        %v376 = vrcp.pop %v375
        %v377 = vmul.f32 %v376, 1.2
        %v378 = vsub.f32 %v377, 0.1
        %v379 = vmax.f32 %v378, 0.0
        %v380 = vmin.f32 %v379, 1.0
        %vm381 = vcmp.gt.f32.partialorder %v371, 0.0
        %v382 = vsel %vm381, 1, 0
        %v383 = vcvt.s32.f32 %v382
        %v384 = vld [vmem:[#allocation5 + $0x8a] sm:$0x1]
        %vm385 = vcmp.gt.f32.partialorder %v384, 0.5
        %v386 = vsel %vm385, %v383, %v380
        %387 = vst [vmem:[%s211] sm:$0x1] %v386
        %s388 = sand.u32 %s102, 1
        %s389 = scalar_lea.sflag [#allocation4], %s388
        %s390 = sand.u32 %s102, 1
        %s391 = scalar_lea.vmem [#allocation7], %s390
        // Predicated region
        $region41: #{tpu_custom_call.1} parent=31 // pred_check
          %p392 = pneg %p112
        $region42: #{tpu_custom_call.1} parent=31 // pred_check_branch
          %394 = sbr.rel (%p392) target = $region44
        $region43: #{tpu_custom_call.1} parent=31 // pred_region
          %s396 = ssub.s32 16, 16
          %397 = vsyncadd %s389, %s396
          %s398 = smul.addr %s21, 16
          %s399 = scalar_lea.hbm %s3, %s398
          %s401 = sshll.u32 %s391, 4
          %s402 = int_to_ptr.vmem [resolvable:$true] %s401
          %404 = dma.vmem_to_hbm [thread:$0]  %s402, 16, %s399, %s389
        $region44: #{tpu_custom_call.1} parent=31 // pred_fallthru
          _
      $region32: #{tpu_custom_call.1} parent=5 // pred_fallthru
        _
      %p405 = scmp.le.s32.totalorder 2, %s16
      // Predicated region
      $region45: #{tpu_custom_call.1} parent=5 // pred_check
        %p406 = pneg %p405
      $region46: #{tpu_custom_call.1} parent=5 // pred_check_branch
        %408 = sbr.rel (%p406) target = $region48
      $region47: #{tpu_custom_call.1} parent=5 // pred_region
        %s409 = ssub.s32 %s16, 2
        // Predicated region
        $region49: #{tpu_custom_call.1} parent=47 // pred_check
          %p410 = pneg %p118
        $region50: #{tpu_custom_call.1} parent=47 // pred_check_branch
          %412 = sbr.rel (%p410) target = $region52
        $region51: #{tpu_custom_call.1} parent=47 // pred_region
          %s413 = sand.u32 %s103, 1
          %s414 = scalar_lea.sflag [#allocation4], %s413
          %s415 = sand.u32 %s103, 1
          %s416 = scalar_lea.vmem [#allocation7], %s415
          %417 = dma.done %s414, 16
        $region52: #{tpu_custom_call.1} parent=47 // pred_fallthru
          _
      $region48: #{tpu_custom_call.1} parent=5 // pred_fallthru
        _
    $region6: #{tpu_custom_call.1} parent=1 // loop_footer
      %s20 = sadd.s32 1, %s16
    $region7: #{tpu_custom_call.1} parent=1 // loop_footer_branch
      %15 = sbr.rel target = $region3
    $region8: #{tpu_custom_call.1} parent=1 // loop_exit
      _
    %418 = vsyncpa [#allocation3], 1
    %s419 = scalar_lea.sflag [#allocation3], 1
    %420 = vsyncpa %s419, 1
    %421 = vsyncpa [#allocation6], 1
    %422 = vsyncpa [#allocation4], 1
    %s423 = scalar_lea.sflag [#allocation4], 1
    %424 = vsyncpa %s423, 1

</llo_original>
